<compile_context>
chip_gen: v6e
topology: v6e:2x2x1
jax: 0.10.0
libtpu: 0.0.40
codegen_flags: <defaults>
</compile_context>

<pallas_src>
import jax
import jax.numpy as jnp
from jax import lax
from jax.experimental import pallas as pl
from jax.experimental.pallas import tpu as pltpu


# --------------------------------------------------------------------------
# Fused kernel: LM head restricted to mask rows + online log-softmax stats +
# answer-weight pooling dots, accumulated across vocab tiles.
#
#   inputs : h  (R, H)  bf16   hidden states at the B*M mask positions
#            w  (H, V)  bf16   LM-head weight (vocab tiled by tv)
#            b  (1, V)  f32    LM-head bias
#            pv (1, V)  f32    softmax(positive_weights) scattered into vocab
#            nv (1, V)  f32    softmax(negative_weights) scattered into vocab
#   output : packed (R, 128) f32 : lane0 = <logits_r, pv>
#                                  lane1 = <logits_r, nv>
#                                  lane2 = logsumexp_v(logits_r)
#
# Downstream tail (tiny, plain JAX on (B, M) scalars in the wrapper):
#   log_softmax(x) = x - lse(x);  sum over masks;  CE over [neg, pos].
# --------------------------------------------------------------------------
def _fused_mask_lm_head_kernel(h_ref, w_ref, b_ref, pv_ref, nv_ref,
                               out_ref, m_sc, l_sc, pd_sc, nd_sc):
    j = pl.program_id(0)

    @pl.when(j == 0)
    def _():
        m_sc[...] = jnp.full_like(m_sc, -jnp.inf)
        l_sc[...] = jnp.zeros_like(l_sc)
        pd_sc[...] = jnp.zeros_like(pd_sc)
        nd_sc[...] = jnp.zeros_like(nd_sc)

    # (R, tv) logits tile: bf16 x bf16 on the MXU, f32 accumulate, f32 bias add.
    logits = (jnp.dot(h_ref[...], w_ref[...],
                      preferred_element_type=jnp.float32)
              + b_ref[...])

    # Online logsumexp across vocab tiles — all R mask rows as one slab.
    m_new = jnp.maximum(m_sc[...], jnp.max(logits, axis=-1, keepdims=True))
    alpha = jnp.exp(m_sc[...] - m_new)
    l_sc[...] = alpha * l_sc[...] + jnp.sum(jnp.exp(logits - m_new),
                                            axis=-1, keepdims=True)
    m_sc[...] = m_new

    # Accumulate the weighted answer-token dots per row (pv/nv are zero outside
    # the answer ids, so this equals the gathered weighted sum).
    pd_sc[...] += jnp.sum(logits * pv_ref[...], axis=-1, keepdims=True)
    nd_sc[...] += jnp.sum(logits * nv_ref[...], axis=-1, keepdims=True)

    @pl.when(j == pl.num_programs(0) - 1)
    def _():
        lse = m_sc[...] + jnp.log(l_sc[...])
        lane = lax.broadcasted_iota(jnp.int32, out_ref.shape, 1)
        out_ref[...] = jnp.where(
            lane == 0, pd_sc[...],
            jnp.where(lane == 1, nd_sc[...],
                      jnp.where(lane == 2, lse, 0.0)))


def fused_mask_lm_head(hidden_masked, w_bf16, b, pos_vec, neg_vec, *, tv=None):
    R, H = hidden_masked.shape
    V = w_bf16.shape[1]
    if tv is None:
        # Small vocab: one grid step (no per-step pipeline overhead).
        # Large vocab: 512-wide tiles (multiple of 256 -> fills v6e/v7x MXU N
        # dim; 4x128 lanes on v5e). bf16 (H, 512) double-buffers in ~2 MiB.
        tv = V if V <= 2048 else 512
    assert V % tv == 0 and tv % 128 == 0

    return pl.pallas_call(
        _fused_mask_lm_head_kernel,
        out_shape=jax.ShapeDtypeStruct((R, 128), jnp.float32),
        grid_spec=pltpu.PrefetchScalarGridSpec(
            num_scalar_prefetch=0,
            grid=(V // tv,),
            in_specs=[
                pl.BlockSpec((R, H), lambda j: (0, 0)),    # resident mask rows
                pl.BlockSpec((H, tv), lambda j: (0, j)),   # streamed weight tile
                pl.BlockSpec((1, tv), lambda j: (0, j)),   # bias tile
                pl.BlockSpec((1, tv), lambda j: (0, j)),   # pos answer vector
                pl.BlockSpec((1, tv), lambda j: (0, j)),   # neg answer vector
            ],
            out_specs=pl.BlockSpec((R, 128), lambda j: (0, 0)),
            scratch_shapes=[pltpu.VMEM((R, 1), jnp.float32)] * 4,
        ),
        compiler_params=pltpu.CompilerParams(
            dimension_semantics=("arbitrary",)),  # vocab axis is a reduction
    )(hidden_masked.astype(jnp.bfloat16), w_bf16,
      b.reshape(1, V).astype(jnp.float32), pos_vec, neg_vec)


# --------------------------------------------------------------------------
# Model wrapper
# --------------------------------------------------------------------------
class Pv2PEFTModelPallas:
    def __init__(self, mask_token_id, positive_token_ids, negative_token_ids,
                 method="prefix", with_answer_weights=False,
                 vocab_size=512, hidden=128, max_seq_len=64,
                 num_mask_tokens=2, key=None):
        assert method == "prefix"
        self.mask_token_id = int(mask_token_id)
        self.positive_token_ids = jnp.array(positive_token_ids, jnp.int32)
        self.negative_token_ids = jnp.array(negative_token_ids, jnp.int32)
        self.vocab_size = vocab_size
        self.hidden = hidden
        self.num_mask_tokens = int(num_mask_tokens)  # static -> jit friendly

        key = jax.random.PRNGKey(0) if key is None else key
        k_emb, k_pos, k_w, k_b, k_pw, k_nw = jax.random.split(key, 6)

        # Synthetic deterministic "backbone": token embedding + positional table
        # (stand-in for the contextualized RoBERTa hidden states) + LM head.
        self.emb = jax.random.normal(k_emb, (vocab_size, hidden), jnp.float32) * 0.02
        self.pos_emb = jax.random.normal(k_pos, (max_seq_len, hidden), jnp.float32) * 0.02
        # LM-head weight kept in bf16 for the MXU (f32 bias / accumulation).
        self.lm_w = (jax.random.normal(k_w, (hidden, vocab_size), jnp.float32)
                     * 0.02).astype(jnp.bfloat16)
        self.lm_b = jax.random.normal(k_b, (vocab_size,), jnp.float32) * 0.02

        if with_answer_weights:
            self.positive_weights = jax.random.uniform(k_pw, (len(positive_token_ids),))
            self.negative_weights = jax.random.uniform(k_nw, (len(negative_token_ids),))
        else:
            self.positive_weights = jnp.ones((len(positive_token_ids),), jnp.float32)
            self.negative_weights = jnp.ones((len(negative_token_ids),), jnp.float32)

    def __call__(self, input_ids, attention_mask, labels, type="eval"):
        # NOTE: attention_mask feeds the real PEFT backbone; the synthetic
        # backbone here ignores it.
        del attention_mask
        B, L = input_ids.shape
        V, H, M = self.vocab_size, self.hidden, self.num_mask_tokens

        # --- mask positions, jit-compatible (M is static). Assumes exactly M
        #     mask tokens per example (same assumption as the torch .view). ---
        col = lax.broadcasted_iota(jnp.int32, (B, L), 1)
        pos_or_L = jnp.where(input_ids == self.mask_token_id, col, L)
        mask_pos = jnp.sort(pos_or_L, axis=1)[:, :M]          # (B, M) ascending
        mask_pos = jnp.clip(mask_pos, 0, L - 1)

        # --- synthetic backbone, evaluated ONLY at mask positions (glue) ---
        ids_at_mask = jnp.take_along_axis(input_ids, mask_pos, axis=1)    # (B, M)
        hidden_masked = self.emb[ids_at_mask] + self.pos_emb[mask_pos]    # (B, M, H)
        hidden_masked = hidden_masked.reshape(B * M, H)

        # --- scatter softmax(answer weights) into vocab-sized vectors (glue) ---
        pos_w = jax.nn.softmax(self.positive_weights)
        neg_w = jax.nn.softmax(self.negative_weights)
        pos_vec = jnp.zeros((1, V), jnp.float32).at[0, self.positive_token_ids].set(pos_w)
        neg_vec = jnp.zeros((1, V), jnp.float32).at[0, self.negative_token_ids].set(neg_w)

        # --- fused Pallas kernel: LM head + log-softmax stats + pooling dots ---
        packed = fused_mask_lm_head(hidden_masked, self.lm_w, self.lm_b,
                                    pos_vec, neg_vec)          # (B*M, 128)
        pd = packed[:, 0].reshape(B, M)    # <logits, pos_vec> per mask row
        nd = packed[:, 1].reshape(B, M)    # <logits, neg_vec> per mask row
        lse = packed[:, 2].reshape(B, M)   # logsumexp over vocab per mask row

        # sum_m  <log_softmax(logits_m), vec>  =  sum_m ( <logits_m, vec> - lse_m * sum(vec) )
        pos_logit = jnp.sum(pd - lse * jnp.sum(pos_vec), axis=1)   # (B,)
        neg_logit = jnp.sum(nd - lse * jnp.sum(neg_vec), axis=1)   # (B,)

        logits2 = jnp.stack([neg_logit, pos_logit], axis=1)        # (B, 2) [neg, pos]

        labels = labels.astype(jnp.int32)
        logz = jax.nn.logsumexp(logits2, axis=1)
        target = jnp.take_along_axis(logits2, labels[:, None], axis=1)[:, 0]
        loss_3 = jnp.mean(logz - target)

        # TODO(synk): loss_1 / loss_2 (train_SC / train_NLI attention-contrastive
        # terms) need the real backbone's per-layer attention maps; 0.0 here.
        loss_1 = jnp.float32(0.0)
        loss_2 = jnp.float32(0.0)
        loss = 1.0 * loss_3 + 0.05 * loss_1 + 0.15 * loss_2
        return logits2, loss, loss_1, loss_2, loss_3


# --------------------------------------------------------------------------
if __name__ == "__main__":
    B, L, H, V = 2, 8, 128, 512
    mask_token_id = 500
    positive_token_ids = [11, 22, 33]
    negative_token_ids = [44, 55]

    model = Pv2PEFTModelPallas(
        mask_token_id, positive_token_ids, negative_token_ids,
        method="prefix", with_answer_weights=False,
        vocab_size=V, hidden=H, max_seq_len=L, num_mask_tokens=2,
        key=jax.random.PRNGKey(0))

    k_ids, _ = jax.random.split(jax.random.PRNGKey(0))
    input_ids = jax.random.randint(k_ids, (B, L), 0, 400, dtype=jnp.int32)
    # two <mask> tokens per example (fixed positions -> equal mask count per row)
    input_ids = input_ids.at[:, 3].set(mask_token_id).at[:, 6].set(mask_token_id)
    attention_mask = jnp.ones((B, L), jnp.int32)
    labels = jnp.array([0, 1], dtype=jnp.int32)

    logits, loss, loss_1, loss_2, loss_3 = model(
        input_ids, attention_mask, labels, type="eval")
    jax.block_until_ready((logits, loss, loss_1, loss_2, loss_3))
    print("KERNEL_OK")
</pallas_src>

<mosaic_0001>
module attributes {stable_mosaic.version = 11 : i64} {
  func.func @_fused_mask_lm_head_kernel(%arg0: i32, %arg1: memref<4x128xbf16, #tpu.memory_space<vmem>>, %arg2: memref<128x512xbf16, #tpu.memory_space<vmem>>, %arg3: memref<1x512xf32, #tpu.memory_space<vmem>>, %arg4: memref<1x512xf32, #tpu.memory_space<vmem>>, %arg5: memref<1x512xf32, #tpu.memory_space<vmem>>, %arg6: memref<4x128xf32, #tpu.memory_space<vmem>>, %arg7: memref<4x1xf32, #tpu.memory_space<vmem>>, %arg8: memref<4x1xf32, #tpu.memory_space<vmem>>, %arg9: memref<4x1xf32, #tpu.memory_space<vmem>>, %arg10: memref<4x1xf32, #tpu.memory_space<vmem>>) attributes {dimension_semantics = [#tpu.dimension_semantics<arbitrary>], iteration_bounds = array<i64: 1>, scalar_prefetch = 0 : i64, scratch_operands = 4 : i64, tpu.core_type = #tpu.core_type<tc>, window_params = [{pipeline_mode = #tpu.pipeline_mode<synchronous>, transform_indices = @transform_0, window_bounds = array<i64: 4, 128>}, {transform_indices = @transform_1, window_bounds = array<i64: 128, 512>}, {transform_indices = @transform_2, window_bounds = array<i64: 1, 512>}, {transform_indices = @transform_3, window_bounds = array<i64: 1, 512>}, {transform_indices = @transform_4, window_bounds = array<i64: 1, 512>}, {pipeline_mode = #tpu.pipeline_mode<synchronous>, transform_indices = @transform_5, window_bounds = array<i64: 4, 128>}]} {
    %c0_i32 = arith.constant 0 : i32
    %0 = arith.cmpi eq, %arg0, %c0_i32 : i32
    %1 = arith.extui %0 : i1 to i32
    %c0_i32_0 = arith.constant 0 : i32
    %2 = arith.cmpi ne, %1, %c0_i32_0 : i32
    scf.if %2 {
      %cst_34 = arith.constant 0xFF800000 : f32
      %45 = vector.broadcast %cst_34 : f32 to vector<4x1xf32>
      %c0_35 = arith.constant 0 : index
      %c0_36 = arith.constant 0 : index
      %46 = vector.load %arg7[%c0_35, %c0_36] : memref<4x1xf32, #tpu.memory_space<vmem>>, vector<4x1xf32>
      tpu.vector_store %arg7[%c0_35, %c0_36], %45 {strides = array<i32>} : memref<4x1xf32, #tpu.memory_space<vmem>>, vector<4x1xf32>,
      %cst_37 = arith.constant 0.000000e+00 : f32
      %47 = vector.broadcast %cst_37 : f32 to vector<4x1xf32>
      %c0_38 = arith.constant 0 : index
      %c0_39 = arith.constant 0 : index
      %48 = vector.load %arg8[%c0_38, %c0_39] : memref<4x1xf32, #tpu.memory_space<vmem>>, vector<4x1xf32>
      tpu.vector_store %arg8[%c0_38, %c0_39], %47 {strides = array<i32>} : memref<4x1xf32, #tpu.memory_space<vmem>>, vector<4x1xf32>,
      %cst_40 = arith.constant 0.000000e+00 : f32
      %49 = vector.broadcast %cst_40 : f32 to vector<4x1xf32>
      %c0_41 = arith.constant 0 : index
      %c0_42 = arith.constant 0 : index
      %50 = vector.load %arg9[%c0_41, %c0_42] : memref<4x1xf32, #tpu.memory_space<vmem>>, vector<4x1xf32>
      tpu.vector_store %arg9[%c0_41, %c0_42], %49 {strides = array<i32>} : memref<4x1xf32, #tpu.memory_space<vmem>>, vector<4x1xf32>,
      %cst_43 = arith.constant 0.000000e+00 : f32
      %51 = vector.broadcast %cst_43 : f32 to vector<4x1xf32>
      %c0_44 = arith.constant 0 : index
      %c0_45 = arith.constant 0 : index
      %52 = vector.load %arg10[%c0_44, %c0_45] : memref<4x1xf32, #tpu.memory_space<vmem>>, vector<4x1xf32>
      tpu.vector_store %arg10[%c0_44, %c0_45], %51 {strides = array<i32>} : memref<4x1xf32, #tpu.memory_space<vmem>>, vector<4x1xf32>,
    } else {
    }
    %c0 = arith.constant 0 : index
    %c0_1 = arith.constant 0 : index
    %3 = vector.load %arg1[%c0, %c0_1] : memref<4x128xbf16, #tpu.memory_space<vmem>>, vector<4x128xbf16>
    %c0_2 = arith.constant 0 : index
    %c0_3 = arith.constant 0 : index
    %4 = vector.load %arg2[%c0_2, %c0_3] : memref<128x512xbf16, #tpu.memory_space<vmem>>, vector<128x512xbf16>
    %cst = arith.constant dense<0.000000e+00> : vector<4x512xf32>
    %5 = tpu.matmul %3, %4, %cst {dimension_numbers = #tpu.dot_dimension_numbers<[1], [0], [0], [1], [0, 0, 1, 1], [], []>} : vector<4x128xbf16>, vector<128x512xbf16>, vector<4x512xf32> -> vector<4x512xf32>
    %c0_4 = arith.constant 0 : index
    %c0_5 = arith.constant 0 : index
    %6 = vector.load %arg3[%c0_4, %c0_5] : memref<1x512xf32, #tpu.memory_space<vmem>>, vector<1x512xf32>
    %7 = vector.broadcast %6 : vector<1x512xf32> to vector<4x512xf32>
    %8 = arith.addf %5, %7 : vector<4x512xf32>
    %c0_6 = arith.constant 0 : index
    %c0_7 = arith.constant 0 : index
    %9 = vector.load %arg7[%c0_6, %c0_7] : memref<4x1xf32, #tpu.memory_space<vmem>>, vector<4x1xf32>
    %cst_8 = arith.constant dense<0xFF800000> : vector<4xf32>
    %10 = vector.multi_reduction <maximumf>, %8, %cst_8 [1] : vector<4x512xf32> to vector<4xf32>
    %11 = vector.shape_cast %10 : vector<4xf32> to vector<4x1xf32>
    %12 = arith.maximumf %9, %11 : vector<4x1xf32>
    %c0_9 = arith.constant 0 : index
    %c0_10 = arith.constant 0 : index
    %13 = vector.load %arg7[%c0_9, %c0_10] : memref<4x1xf32, #tpu.memory_space<vmem>>, vector<4x1xf32>
    %14 = arith.subf %13, %12 : vector<4x1xf32>
    %15 = math.exp %14 : vector<4x1xf32>
    %c0_11 = arith.constant 0 : index
    %c0_12 = arith.constant 0 : index
    %16 = vector.load %arg8[%c0_11, %c0_12] : memref<4x1xf32, #tpu.memory_space<vmem>>, vector<4x1xf32>
    %17 = arith.mulf %15, %16 : vector<4x1xf32>
    %18 = vector.broadcast %12 : vector<4x1xf32> to vector<4x512xf32>
    %19 = arith.subf %8, %18 : vector<4x512xf32>
    %20 = math.exp %19 : vector<4x512xf32>
    %cst_13 = arith.constant dense<0.000000e+00> : vector<4xf32>
    %21 = vector.multi_reduction <add>, %20, %cst_13 [1] : vector<4x512xf32> to vector<4xf32>
    %22 = vector.shape_cast %21 : vector<4xf32> to vector<4x1xf32>
    %23 = arith.addf %17, %22 : vector<4x1xf32>
    %c0_14 = arith.constant 0 : index
    %c0_15 = arith.constant 0 : index
    %24 = vector.load %arg8[%c0_14, %c0_15] : memref<4x1xf32, #tpu.memory_space<vmem>>, vector<4x1xf32>
    tpu.vector_store %arg8[%c0_14, %c0_15], %23 {strides = array<i32>} : memref<4x1xf32, #tpu.memory_space<vmem>>, vector<4x1xf32>,
    %c0_16 = arith.constant 0 : index
    %c0_17 = arith.constant 0 : index
    %25 = vector.load %arg7[%c0_16, %c0_17] : memref<4x1xf32, #tpu.memory_space<vmem>>, vector<4x1xf32>
    tpu.vector_store %arg7[%c0_16, %c0_17], %12 {strides = array<i32>} : memref<4x1xf32, #tpu.memory_space<vmem>>, vector<4x1xf32>,
    %c0_18 = arith.constant 0 : index
    %c0_19 = arith.constant 0 : index
    %26 = vector.load %arg9[%c0_18, %c0_19] : memref<4x1xf32, #tpu.memory_space<vmem>>, vector<4x1xf32>
    %c0_20 = arith.constant 0 : index
    %c0_21 = arith.constant 0 : index
    %27 = vector.load %arg4[%c0_20, %c0_21] : memref<1x512xf32, #tpu.memory_space<vmem>>, vector<1x512xf32>
    %28 = vector.broadcast %27 : vector<1x512xf32> to vector<4x512xf32>
    %29 = arith.mulf %8, %28 : vector<4x512xf32>
    %cst_22 = arith.constant dense<0.000000e+00> : vector<4xf32>
    %30 = vector.multi_reduction <add>, %29, %cst_22 [1] : vector<4x512xf32> to vector<4xf32>
    %31 = vector.shape_cast %30 : vector<4xf32> to vector<4x1xf32>
    %32 = arith.addf %26, %31 : vector<4x1xf32>
    %c0_23 = arith.constant 0 : index
    %c0_24 = arith.constant 0 : index
    %33 = vector.load %arg9[%c0_23, %c0_24] : memref<4x1xf32, #tpu.memory_space<vmem>>, vector<4x1xf32>
    tpu.vector_store %arg9[%c0_23, %c0_24], %32 {strides = array<i32>} : memref<4x1xf32, #tpu.memory_space<vmem>>, vector<4x1xf32>,
    %c0_25 = arith.constant 0 : index
    %c0_26 = arith.constant 0 : index
    %34 = vector.load %arg10[%c0_25, %c0_26] : memref<4x1xf32, #tpu.memory_space<vmem>>, vector<4x1xf32>
    %c0_27 = arith.constant 0 : index
    %c0_28 = arith.constant 0 : index
    %35 = vector.load %arg5[%c0_27, %c0_28] : memref<1x512xf32, #tpu.memory_space<vmem>>, vector<1x512xf32>
    %36 = vector.broadcast %35 : vector<1x512xf32> to vector<4x512xf32>
    %37 = arith.mulf %8, %36 : vector<4x512xf32>
    %cst_29 = arith.constant dense<0.000000e+00> : vector<4xf32>
    %38 = vector.multi_reduction <add>, %37, %cst_29 [1] : vector<4x512xf32> to vector<4xf32>
    %39 = vector.shape_cast %38 : vector<4xf32> to vector<4x1xf32>
    %40 = arith.addf %34, %39 : vector<4x1xf32>
    %c0_30 = arith.constant 0 : index
    %c0_31 = arith.constant 0 : index
    %41 = vector.load %arg10[%c0_30, %c0_31] : memref<4x1xf32, #tpu.memory_space<vmem>>, vector<4x1xf32>
    tpu.vector_store %arg10[%c0_30, %c0_31], %40 {strides = array<i32>} : memref<4x1xf32, #tpu.memory_space<vmem>>, vector<4x1xf32>,
    %c0_i32_32 = arith.constant 0 : i32
    %42 = arith.cmpi eq, %arg0, %c0_i32_32 : i32
    %43 = arith.extui %42 : i1 to i32
    %c0_i32_33 = arith.constant 0 : i32
    %44 = arith.cmpi ne, %43, %c0_i32_33 : i32
    scf.if %44 {
      %c0_34 = arith.constant 0 : index
      %c0_35 = arith.constant 0 : index
      %45 = vector.load %arg7[%c0_34, %c0_35] : memref<4x1xf32, #tpu.memory_space<vmem>>, vector<4x1xf32>
      %c0_36 = arith.constant 0 : index
      %c0_37 = arith.constant 0 : index
      %46 = vector.load %arg8[%c0_36, %c0_37] : memref<4x1xf32, #tpu.memory_space<vmem>>, vector<4x1xf32>
      %47 = math.log %46 : vector<4x1xf32>
      %48 = arith.addf %45, %47 : vector<4x1xf32>
      %49 = tpu.iota {dimensions = array<i32: 1>} : vector<4x128xi32>
      %c0_i32_38 = arith.constant 0 : i32
      %50 = vector.broadcast %c0_i32_38 : i32 to vector<4x128xi32>
      %51 = arith.cmpi eq, %49, %50 : vector<4x128xi32>
      %c0_39 = arith.constant 0 : index
      %c0_40 = arith.constant 0 : index
      %52 = vector.load %arg9[%c0_39, %c0_40] : memref<4x1xf32, #tpu.memory_space<vmem>>, vector<4x1xf32>
      %c1_i32 = arith.constant 1 : i32
      %53 = vector.broadcast %c1_i32 : i32 to vector<4x128xi32>
      %54 = arith.cmpi eq, %49, %53 : vector<4x128xi32>
      %c0_41 = arith.constant 0 : index
      %c0_42 = arith.constant 0 : index
      %55 = vector.load %arg10[%c0_41, %c0_42] : memref<4x1xf32, #tpu.memory_space<vmem>>, vector<4x1xf32>
      %c2_i32 = arith.constant 2 : i32
      %56 = vector.broadcast %c2_i32 : i32 to vector<4x128xi32>
      %57 = arith.cmpi eq, %49, %56 : vector<4x128xi32>
      %cst_43 = arith.constant 0.000000e+00 : f32
      %58 = vector.shape_cast %48 : vector<4x1xf32> to vector<4x1xf32>
      %59 = vector.broadcast %58 : vector<4x1xf32> to vector<4x128xf32>
      %60 = vector.broadcast %cst_43 : f32 to vector<4x128xf32>
      %61 = arith.select %57, %59, %60 : vector<4x128xi1>, vector<4x128xf32>
      %62 = vector.shape_cast %55 : vector<4x1xf32> to vector<4x1xf32>
      %63 = vector.broadcast %62 : vector<4x1xf32> to vector<4x128xf32>
      %64 = arith.select %54, %63, %61 : vector<4x128xi1>, vector<4x128xf32>
      %65 = vector.shape_cast %52 : vector<4x1xf32> to vector<4x1xf32>
      %66 = vector.broadcast %65 : vector<4x1xf32> to vector<4x128xf32>
      %67 = arith.select %51, %66, %64 : vector<4x128xi1>, vector<4x128xf32>
      %c0_44 = arith.constant 0 : index
      %c0_45 = arith.constant 0 : index
      %68 = vector.load %arg6[%c0_44, %c0_45] : memref<4x128xf32, #tpu.memory_space<vmem>>, vector<4x128xf32>
      tpu.vector_store %arg6[%c0_44, %c0_45], %67 {strides = array<i32>} : memref<4x128xf32, #tpu.memory_space<vmem>>, vector<4x128xf32>,
    } else {
    }
    return
  }
  func.func @transform_0(%arg0: i32) -> (i32, i32) {
    %c0_i32 = arith.constant 0 : i32
    %c0_i32_0 = arith.constant 0 : i32
    %c0_i32_1 = arith.constant 0 : i32
    return %c0_i32, %c0_i32_0 : i32, i32
  }
  func.func @transform_1(%arg0: i32) -> (i32, i32) {
    %c0_i32 = arith.constant 0 : i32
    %c0_i32_0 = arith.constant 0 : i32
    return %c0_i32, %arg0 : i32, i32
  }
  func.func @transform_2(%arg0: i32) -> (i32, i32) {
    %c0_i32 = arith.constant 0 : i32
    %c0_i32_0 = arith.constant 0 : i32
    return %c0_i32, %arg0 : i32, i32
  }
  func.func @transform_3(%arg0: i32) -> (i32, i32) {
    %c0_i32 = arith.constant 0 : i32
    %c0_i32_0 = arith.constant 0 : i32
    return %c0_i32, %arg0 : i32, i32
  }
  func.func @transform_4(%arg0: i32) -> (i32, i32) {
    %c0_i32 = arith.constant 0 : i32
    %c0_i32_0 = arith.constant 0 : i32
    return %c0_i32, %arg0 : i32, i32
  }
  func.func @transform_5(%arg0: i32) -> (i32, i32) {
    %c0_i32 = arith.constant 0 : i32
    %c0_i32_0 = arith.constant 0 : i32
    %c0_i32_1 = arith.constant 0 : i32
    return %c0_i32, %c0_i32_0 : i32, i32
  }
}

</mosaic_0001>

<llo_original>
// kernel: tpu_custom_call.1
$region0: #{tpu_custom_call.1}
  #allocation0 [shape = 'u32[]', space=smem, size = 0x4, offset = 0x4, fixed_abs, tag = 'smem constant byte address 0x4 - core index']
  #allocation1 [shape = 'u32[144,128]{1,0:T(1,128)}', space=vmem, size = 0x12000, scoped, tag = 'internal scratch']
  #allocation2 [shape = 'f32[4,1]{1,0:T(4,128)}', space=vmem, size = 0x800, scoped, tag = 'scratch operand']
  #allocation3 [shape = 'f32[4,1]{1,0:T(4,128)}', space=vmem, size = 0x800, scoped, tag = 'scratch operand']
  #allocation4 [shape = 'f32[4,1]{1,0:T(4,128)}', space=vmem, size = 0x800, scoped, tag = 'scratch operand']
  #allocation5 [shape = 'f32[4,1]{1,0:T(4,128)}', space=vmem, size = 0x800, scoped, tag = 'scratch operand']
  %s0 = inlined_call_operand.hbm [shape: bf16[4,128], index: 0, kind: input, shape index: {}]
  %s1 = inlined_call_operand.hbm [shape: bf16[128,512], index: 1, kind: input, shape index: {}]
  %s2 = inlined_call_operand.hbm [shape: f32[1,512], index: 2, kind: input, shape index: {}]
  %s3 = inlined_call_operand.vmem [shape: f32[1,512], index: 3, kind: input, shape index: {}]
  %s4 = inlined_call_operand.hbm [shape: f32[1,512], index: 4, kind: input, shape index: {}]
  %s5 = inlined_call_operand.hbm [shape: f32[4,128], index: 5, kind: output, shape index: {}]
  %s6 = sld [smem:[#allocation0]]
  $region54: #{tpu_custom_call.1} parent=0
    _
  %s8 = ssub.s32 1, %s6
  %s9 = scalar_select 0, %s8, %s6
  $region1: #{tpu_custom_call.1} parent=0
    #allocation6 [shape = 'u8[1024]{0}', space=vmem, size = 0x400, scoped, tag = 'input window, operand 0, single buffered']
    #allocation7 [shape = 's32[1]{0}', space=sflag, size = 0x4, scoped, tag = 'scoped memory for tpu_custom_call.1']
    #allocation8 [shape = 's32[1]{0}', space=sflag, size = 0x4, scoped, tag = 'scoped memory for tpu_custom_call.1']
    #allocation9 [shape = 'u8[131072]{0}', space=vmem, size = 0x20000, scoped, tag = 'input window, operand 1, single buffered']
    #allocation10 [shape = 's32[1]{0}', space=sflag, size = 0x4, scoped, tag = 'scoped memory for tpu_custom_call.1']
    #allocation11 [shape = 'u8[2048]{0}', space=vmem, size = 0x800, scoped, tag = 'input window, operand 2, single buffered']
    #allocation12 [shape = 'u8[2048]{0}', space=vmem, size = 0x800, scoped, tag = 'input window, operand 4, single buffered']
    #allocation13 [shape = 's32[1]{0}', space=sflag, size = 0x4, scoped, tag = 'scoped memory for tpu_custom_call.1']
    #allocation14 [shape = 'u8[2048]{0}', space=vmem, size = 0x800, scoped, tag = 'output window, operand 0, single buffered']
    %10 = vsyncpa [#allocation7], 0
    %11 = vsyncpa [#allocation10], 0
    %12 = vsyncpa [#allocation13], 0
    %13 = vsyncpa [#allocation8], 0
    // Predicated region
    $region2: #{tpu_custom_call.1} parent=1 // pred_check
      _
    $region3: #{tpu_custom_call.1} parent=1 // pred_check_branch
      %15 = sbr.rel (0) target = $region5
    $region4: #{tpu_custom_call.1} parent=1 // pred_region
      %s17 = ssub.s32 32, 32
      %18 = vsyncadd [#allocation7], %s17
      %s20 = sshll.u32 [#allocation6], 4
      %s21 = int_to_ptr.vmem [resolvable:$true] %s20
      %23 = dma.hbm_to_vmem [thread:$0]  %s0, 32, %s21, [#allocation7]
    $region5: #{tpu_custom_call.1} parent=1 // pred_fallthru
      _
    // Predicated region
    $region6: #{tpu_custom_call.1} parent=1 // pred_check
      _
    $region7: #{tpu_custom_call.1} parent=1 // pred_check_branch
      %25 = sbr.rel (0) target = $region9
    $region8: #{tpu_custom_call.1} parent=1 // pred_region
      %s27 = ssub.s32 4096, 4096
      %28 = vsyncadd [#allocation10], %s27
      %s29 = sshll.u32 [#allocation9], 4
      %s30 = int_to_ptr.vmem [resolvable:$true] %s29
      %35 = dma.hbm_to_vmem [thread:$0]  %s1, 4096, %s30, [#allocation10], 256, 256, 16
    $region9: #{tpu_custom_call.1} parent=1 // pred_fallthru
      _
    // Predicated region
    $region10: #{tpu_custom_call.1} parent=1 // pred_check
      _
    $region11: #{tpu_custom_call.1} parent=1 // pred_check_branch
      %37 = sbr.rel (0) target = $region13
    $region12: #{tpu_custom_call.1} parent=1 // pred_region
      %s39 = ssub.s32 64, 64
      %40 = vsyncadd [#allocation10], %s39
      %s42 = sshll.u32 [#allocation11], 4
      %s43 = int_to_ptr.vmem [resolvable:$true] %s42
      %45 = dma.hbm_to_vmem [thread:$0]  %s2, 64, %s43, [#allocation10]
    $region13: #{tpu_custom_call.1} parent=1 // pred_fallthru
      _
    // Predicated region
    $region14: #{tpu_custom_call.1} parent=1 // pred_check
      _
    $region15: #{tpu_custom_call.1} parent=1 // pred_check_branch
      %47 = sbr.rel (0) target = $region17
    $region16: #{tpu_custom_call.1} parent=1 // pred_region
      _
    $region17: #{tpu_custom_call.1} parent=1 // pred_fallthru
      _
    // Predicated region
    $region18: #{tpu_custom_call.1} parent=1 // pred_check
      _
    $region19: #{tpu_custom_call.1} parent=1 // pred_check_branch
      %49 = sbr.rel (0) target = $region21
    $region20: #{tpu_custom_call.1} parent=1 // pred_region
      %s51 = ssub.s32 64, 64
      %52 = vsyncadd [#allocation13], %s51
      %s54 = sshll.u32 [#allocation12], 4
      %s55 = int_to_ptr.vmem [resolvable:$true] %s54
      %57 = dma.hbm_to_vmem [thread:$0]  %s4, 64, %s55, [#allocation13]
    $region21: #{tpu_custom_call.1} parent=1 // pred_fallthru
      _
    // Predicated region
    $region22: #{tpu_custom_call.1} parent=1 // pred_check
      _
    $region23: #{tpu_custom_call.1} parent=1 // pred_check_branch
      %59 = sbr.rel (0) target = $region25
    $region24: #{tpu_custom_call.1} parent=1 // pred_region
      %60 = dma.done [#allocation7], 32
    $region25: #{tpu_custom_call.1} parent=1 // pred_fallthru
      _
    // Predicated region
    $region26: #{tpu_custom_call.1} parent=1 // pred_check
      _
    $region27: #{tpu_custom_call.1} parent=1 // pred_check_branch
      %62 = sbr.rel (0) target = $region29
    $region28: #{tpu_custom_call.1} parent=1 // pred_region
      %63 = dma.done [#allocation10], 4096
    $region29: #{tpu_custom_call.1} parent=1 // pred_fallthru
      _
    // Predicated region
    $region30: #{tpu_custom_call.1} parent=1 // pred_check
      _
    $region31: #{tpu_custom_call.1} parent=1 // pred_check_branch
      %65 = sbr.rel (0) target = $region33
    $region32: #{tpu_custom_call.1} parent=1 // pred_region
      %66 = dma.done [#allocation10], 64
    $region33: #{tpu_custom_call.1} parent=1 // pred_fallthru
      _
    // Predicated region
    $region34: #{tpu_custom_call.1} parent=1 // pred_check
      _
    $region35: #{tpu_custom_call.1} parent=1 // pred_check_branch
      %68 = sbr.rel (0) target = $region37
    $region36: #{tpu_custom_call.1} parent=1 // pred_region
      %69 = dma.done [#allocation13], 64
    $region37: #{tpu_custom_call.1} parent=1 // pred_fallthru
      _
    %p71 = scmp.eq.s32.totalorder 0, 0
    // Predicated region
    $region38: #{tpu_custom_call.1} parent=1 // pred_check
      %p72 = pneg %p71
    $region39: #{tpu_custom_call.1} parent=1 // pred_check_branch
      %74 = sbr.rel (%p72) target = $region41
    $region40: #{tpu_custom_call.1} parent=1 // pred_region
      %vm75 = vcmask 3072
      %76 = vst.msk [vmem:[#allocation2] sm:$0xf] %vm75, -inf
      %77 = vst.msk [vmem:[#allocation3] sm:$0xf] %vm75, 0.0
      %78 = vst.msk [vmem:[#allocation4] sm:$0xf] %vm75, 0.0
      %79 = vst.msk [vmem:[#allocation5] sm:$0xf] %vm75, 0.0
    $region41: #{tpu_custom_call.1} parent=1 // pred_fallthru
      _
    %v80 = vld [vmem:[#allocation6] sm:$0x3]
    %v81 = vld [vmem:[#allocation9] sm:$0xff]
    %v82 = vld [vmem:[#allocation9 + $0x8] sm:$0xff]
    %v83 = vld [vmem:[#allocation9 + $0x10] sm:$0xff]
    %v84 = vld [vmem:[#allocation9 + $0x18] sm:$0xff]
    %v85 = vld [vmem:[#allocation9 + $0x20] sm:$0xff]
    %v86 = vld [vmem:[#allocation9 + $0x28] sm:$0xff]
    %v87 = vld [vmem:[#allocation9 + $0x30] sm:$0xff]
    %v88 = vld [vmem:[#allocation9 + $0x38] sm:$0xff]
    %v89 = vld [vmem:[#allocation9 + $0x40] sm:$0xff]
    %v90 = vld [vmem:[#allocation9 + $0x48] sm:$0xff]
    %v91 = vld [vmem:[#allocation9 + $0x50] sm:$0xff]
    %v92 = vld [vmem:[#allocation9 + $0x58] sm:$0xff]
    %v93 = vld [vmem:[#allocation9 + $0x60] sm:$0xff]
    %v94 = vld [vmem:[#allocation9 + $0x68] sm:$0xff]
    %v95 = vld [vmem:[#allocation9 + $0x70] sm:$0xff]
    %v96 = vld [vmem:[#allocation9 + $0x78] sm:$0xff]
    %v97 = vld [vmem:[#allocation9 + $0x80] sm:$0xff]
    %v98 = vld [vmem:[#allocation9 + $0x88] sm:$0xff]
    %v99 = vld [vmem:[#allocation9 + $0x90] sm:$0xff]
    %v100 = vld [vmem:[#allocation9 + $0x98] sm:$0xff]
    %v101 = vld [vmem:[#allocation9 + $0xa0] sm:$0xff]
    %v102 = vld [vmem:[#allocation9 + $0xa8] sm:$0xff]
    %v103 = vld [vmem:[#allocation9 + $0xb0] sm:$0xff]
    %v104 = vld [vmem:[#allocation9 + $0xb8] sm:$0xff]
    %v105 = vld [vmem:[#allocation9 + $0xc0] sm:$0xff]
    %v106 = vld [vmem:[#allocation9 + $0xc8] sm:$0xff]
    %v107 = vld [vmem:[#allocation9 + $0xd0] sm:$0xff]
    %v108 = vld [vmem:[#allocation9 + $0xd8] sm:$0xff]
    %v109 = vld [vmem:[#allocation9 + $0xe0] sm:$0xff]
    %v110 = vld [vmem:[#allocation9 + $0xe8] sm:$0xff]
    %v111 = vld [vmem:[#allocation9 + $0xf0] sm:$0xff]
    %v112 = vld [vmem:[#allocation9 + $0xf8] sm:$0xff]
    %v113 = vld [vmem:[#allocation11] sm:$0xf]
    %v115 = vlaneseq
    %v116 = vshrl.u32 %v115, 7
    %v117 = vsub.s32 0, %v116
    %v118 = vrot.slane %v113, %v117
    %v119 = vlaneseq
    %v120 = vshrl.u32 %v119, 7
    %v121 = vsub.s32 1, %v120
    %v122 = vrot.slane %v113, %v121
    %v123 = vlaneseq
    %v124 = vshrl.u32 %v123, 7
    %v125 = vsub.s32 2, %v124
    %v126 = vrot.slane %v113, %v125
    %v127 = vlaneseq
    %v128 = vshrl.u32 %v127, 7
    %v129 = vsub.s32 3, %v128
    %v130 = vrot.slane %v113, %v129
    %v167 = vunpack.c.l.b16 %v81
    %v168 = vunpack.c.h.b16 %v81
    %v169 = vunpack.c.l.b16 %v82
    %v170 = vunpack.c.h.b16 %v82
    %v171 = vunpack.c.l.b16 %v83
    %v172 = vunpack.c.h.b16 %v83
    %v173 = vunpack.c.l.b16 %v84
    %v174 = vunpack.c.h.b16 %v84
    %v175 = vunpack.c.l.b16 %v85
    %v176 = vunpack.c.h.b16 %v85
    %v177 = vunpack.c.l.b16 %v86
    %v178 = vunpack.c.h.b16 %v86
    %v179 = vunpack.c.l.b16 %v87
    %v180 = vunpack.c.h.b16 %v87
    %v181 = vunpack.c.l.b16 %v88
    %v182 = vunpack.c.h.b16 %v88
    %v183 = vunpack.c.l.b16 %v89
    %v184 = vunpack.c.h.b16 %v89
    %v185 = vunpack.c.l.b16 %v90
    %v186 = vunpack.c.h.b16 %v90
    %v187 = vunpack.c.l.b16 %v91
    %v188 = vunpack.c.h.b16 %v91
    %v189 = vunpack.c.l.b16 %v92
    %v190 = vunpack.c.h.b16 %v92
    %v191 = vunpack.c.l.b16 %v93
    %v192 = vunpack.c.h.b16 %v93
    %v193 = vunpack.c.l.b16 %v94
    %v194 = vunpack.c.h.b16 %v94
    %v195 = vunpack.c.l.b16 %v95
    %v196 = vunpack.c.h.b16 %v95
    %v197 = vunpack.c.l.b16 %v96
    %v198 = vunpack.c.h.b16 %v96
    %v199 = vunpack.c.l.b16 %v97
    %v200 = vunpack.c.h.b16 %v97
    %v201 = vunpack.c.l.b16 %v98
    %v202 = vunpack.c.h.b16 %v98
    %v203 = vunpack.c.l.b16 %v99
    %v204 = vunpack.c.h.b16 %v99
    %v205 = vunpack.c.l.b16 %v100
    %v206 = vunpack.c.h.b16 %v100
    %v207 = vunpack.c.l.b16 %v101
    %v208 = vunpack.c.h.b16 %v101
    %v209 = vunpack.c.l.b16 %v102
    %v210 = vunpack.c.h.b16 %v102
    %v211 = vunpack.c.l.b16 %v103
    %v212 = vunpack.c.h.b16 %v103
    %v213 = vunpack.c.l.b16 %v104
    %v214 = vunpack.c.h.b16 %v104
    %v215 = vunpack.c.l.b16 %v105
    %v216 = vunpack.c.h.b16 %v105
    %v217 = vunpack.c.l.b16 %v106
    %v218 = vunpack.c.h.b16 %v106
    %v219 = vunpack.c.l.b16 %v107
    %v220 = vunpack.c.h.b16 %v107
    %v221 = vunpack.c.l.b16 %v108
    %v222 = vunpack.c.h.b16 %v108
    %v223 = vunpack.c.l.b16 %v109
    %v224 = vunpack.c.h.b16 %v109
    %v225 = vunpack.c.l.b16 %v110
    %v226 = vunpack.c.h.b16 %v110
    %v227 = vunpack.c.l.b16 %v111
    %v228 = vunpack.c.h.b16 %v111
    %v229 = vunpack.c.l.b16 %v112
    %v230 = vunpack.c.h.b16 %v112
    %v231 = vpack.c.b16 %v171, %v167
    %v232 = vpack.c.b16 %v172, %v168
    %v233 = vpack.c.b16 %v173, %v169
    %v234 = vpack.c.b16 %v174, %v170
    %v235 = vpack.c.b16 %v179, %v175
    %v236 = vpack.c.b16 %v180, %v176
    %v237 = vpack.c.b16 %v181, %v177
    %v238 = vpack.c.b16 %v182, %v178
    %v239 = vpack.c.b16 %v187, %v183
    %v240 = vpack.c.b16 %v188, %v184
    %v241 = vpack.c.b16 %v189, %v185
    %v242 = vpack.c.b16 %v190, %v186
    %v243 = vpack.c.b16 %v195, %v191
    %v244 = vpack.c.b16 %v196, %v192
    %v245 = vpack.c.b16 %v197, %v193
    %v246 = vpack.c.b16 %v198, %v194
    %v247 = vpack.c.b16 %v203, %v199
    %v248 = vpack.c.b16 %v204, %v200
    %v249 = vpack.c.b16 %v205, %v201
    %v250 = vpack.c.b16 %v206, %v202
    %v251 = vpack.c.b16 %v211, %v207
    %v252 = vpack.c.b16 %v212, %v208
    %v253 = vpack.c.b16 %v213, %v209
    %v254 = vpack.c.b16 %v214, %v210
    %v255 = vpack.c.b16 %v219, %v215
    %v256 = vpack.c.b16 %v220, %v216
    %v257 = vpack.c.b16 %v221, %v217
    %v258 = vpack.c.b16 %v222, %v218
    %v259 = vpack.c.b16 %v227, %v223
    %v260 = vpack.c.b16 %v228, %v224
    %v261 = vpack.c.b16 %v229, %v225
    %v262 = vpack.c.b16 %v230, %v226
    %295 = vmatprep.subr.bf16.mxu0 %v260
    %296 = vmatpush1.bf16.msra.mxu0 %v259
    %297 = vmatprep.subr.bf16.mxu0 %v256
    %298 = vmatpush1.bf16.msra.mxu0 %v255
    %299 = vmatprep.subr.bf16.mxu0 %v252
    %300 = vmatpush1.bf16.msra.mxu0 %v251
    %301 = vmatprep.subr.bf16.mxu0 %v248
    %302 = vmatpush1.bf16.msra.mxu0 %v247
    %303 = vmatprep.subr.bf16.mxu0 %v244
    %304 = vmatpush1.bf16.msra.mxu0 %v243
    %305 = vmatprep.subr.bf16.mxu0 %v240
    %306 = vmatpush1.bf16.msra.mxu0 %v239
    %307 = vmatprep.subr.bf16.mxu0 %v236
    %308 = vmatpush1.bf16.msra.mxu0 %v235
    %309 = vmatprep.subr.bf16.mxu0 %v232
    %310 = vmatpush1.bf16.msra.mxu0 %v231
    %311 = vmatprep.subr.bf16.mxu0 0
    %312 = vmatpush2.bf16.msra.mxu0 0
    %313 = vmatprep.subr.bf16.mxu0 0
    %314 = vmatpush2.bf16.msra.mxu0 0
    %315 = vmatprep.subr.bf16.mxu0 0
    %316 = vmatpush2.bf16.msra.mxu0 0
    %317 = vmatprep.subr.bf16.mxu0 0
    %318 = vmatpush2.bf16.msra.mxu0 0
    %319 = vmatprep.subr.bf16.mxu0 0
    %320 = vmatpush2.bf16.msra.mxu0 0
    %321 = vmatprep.subr.bf16.mxu0 0
    %322 = vmatpush2.bf16.msra.mxu0 0
    %323 = vmatprep.subr.bf16.mxu0 0
    %324 = vmatpush2.bf16.msra.mxu0 0
    %325 = vmatprep.subr.bf16.mxu0 0
    %326 = vmatpush2.bf16.msra.mxu0 0
    %327 = vmatprep.mubr.bf16.mxu0 0
    %328 = vmatmul.mubr.bf16.gmra.mxu0 %v80
    %v329 = vpop.f32.mrf.mxu0
    %v330 = vadd.f32 %v118, %v329
    %v331 = vpop.f32.mrf.mxu0
    %v332 = vadd.f32 %v122, %v331
    %v333 = vpop.f32.mrf.mxu0
    %v334 = vpop.f32.mrf.mxu0
    %335 = vdwg.mxu0
    %336 = vmatprep.subr.bf16.mxu0 %v262
    %337 = vmatpush1.bf16.msra.mxu0 %v261
    %338 = vmatprep.subr.bf16.mxu0 %v258
    %339 = vmatpush1.bf16.msra.mxu0 %v257
    %340 = vmatprep.subr.bf16.mxu0 %v254
    %341 = vmatpush1.bf16.msra.mxu0 %v253
    %342 = vmatprep.subr.bf16.mxu0 %v250
    %343 = vmatpush1.bf16.msra.mxu0 %v249
    %344 = vmatprep.subr.bf16.mxu0 %v246
    %345 = vmatpush1.bf16.msra.mxu0 %v245
    %346 = vmatprep.subr.bf16.mxu0 %v242
    %347 = vmatpush1.bf16.msra.mxu0 %v241
    %348 = vmatprep.subr.bf16.mxu0 %v238
    %349 = vmatpush1.bf16.msra.mxu0 %v237
    %350 = vmatprep.subr.bf16.mxu0 %v234
    %351 = vmatpush1.bf16.msra.mxu0 %v233
    %352 = vmatprep.subr.bf16.mxu0 0
    %353 = vmatpush2.bf16.msra.mxu0 0
    %354 = vmatprep.subr.bf16.mxu0 0
    %355 = vmatpush2.bf16.msra.mxu0 0
    %356 = vmatprep.subr.bf16.mxu0 0
    %357 = vmatpush2.bf16.msra.mxu0 0
    %358 = vmatprep.subr.bf16.mxu0 0
    %359 = vmatpush2.bf16.msra.mxu0 0
    %360 = vmatprep.subr.bf16.mxu0 0
    %361 = vmatpush2.bf16.msra.mxu0 0
    %362 = vmatprep.subr.bf16.mxu0 0
    %363 = vmatpush2.bf16.msra.mxu0 0
    %364 = vmatprep.subr.bf16.mxu0 0
    %365 = vmatpush2.bf16.msra.mxu0 0
    %366 = vmatprep.subr.bf16.mxu0 0
    %367 = vmatpush2.bf16.msra.mxu0 0
    %368 = vmatprep.mubr.bf16.mxu0 0
    %369 = vmatmul.mubr.bf16.gmra.mxu0 %v80
    %v370 = vpop.f32.mrf.mxu0
    %v371 = vadd.f32 %v126, %v370
    %v372 = vpop.f32.mrf.mxu0
    %v373 = vadd.f32 %v130, %v372
    %v374 = vpop.f32.mrf.mxu0
    %v375 = vpop.f32.mrf.mxu0
    %376 = vdwg.mxu0
    %v377 = vld [vmem:[#allocation2] sm:$0xf]
    %vm378 = vcmask 1043456
    %v379 = vsel %vm378, %v330, -inf
    %v380 = vsel %vm378, %v332, -inf
    %v381 = vsel %vm378, %v371, -inf
    %v382 = vsel %vm378, %v373, -inf
    %v383 = vmax.f32 %v379, %v380
    %v384 = vmax.f32 %v381, %v382
    %v385 = vmax.f32 %v383, %v384
    %386 = vmax.xlane.f32.xlu0 %v385
    %v387 = vpop.xlane.xlu0 %386
    %v388 = vmax.f32 %v377, %v387
    %v389 = vsub.f32 %v377, %v388
    %v390 = vmul.f32 %v389, 1.442695
    %v391 = vpow.pop %v390
    %v392 = vld [vmem:[#allocation3] sm:$0xf]
    %v393 = vmul.f32 %v391, %v392
    %395 = vset.pattern.permute.xlu0 0
    %396 = vperm.xlu0 %395, %v388
    %v397 = vpop.permute.xlu0 %396
    %v399 = vsub.f32 %v330, %v397
    %v400 = vsub.f32 %v332, %v397
    %v401 = vsub.f32 %v371, %v397
    %v402 = vsub.f32 %v373, %v397
    %v403 = vmul.f32 %v399, 1.442695
    %v404 = vpow.pop %v403
    %v405 = vmul.f32 %v400, 1.442695
    %v406 = vpow.pop %v405
    %v407 = vmul.f32 %v401, 1.442695
    %v408 = vpow.pop %v407
    %v409 = vmul.f32 %v402, 1.442695
    %v410 = vpow.pop %v409
    %v411 = vsel %vm378, %v404, 0.0
    %v412 = vsel %vm378, %v406, 0.0
    %v413 = vadd.f32 %v411, %v412
    %v414 = vsel %vm378, %v408, 0.0
    %v415 = vadd.f32 %v413, %v414
    %v416 = vsel %vm378, %v410, 0.0
    %v417 = vadd.f32 %v415, %v416
    %418 = vadd.xlane.f32.xlu0 %v417
    %v419 = vpop.xlane.xlu0 %418
    %v420 = vadd.f32 %v393, %v419
    %vm421 = vcmask 3072
    %422 = vst.msk [vmem:[#allocation3] sm:$0xf] %vm421, %v420
    %423 = vst.msk [vmem:[#allocation2] sm:$0xf] %vm421, %v388
    %v424 = vld [vmem:[#allocation4] sm:$0xf]
    %v425 = vld [vmem:[%s3] sm:$0xf]
    %v427 = vlaneseq
    %v428 = vshrl.u32 %v427, 7
    %v429 = vsub.s32 0, %v428
    %v430 = vrot.slane %v425, %v429
    %v431 = vlaneseq
    %v432 = vshrl.u32 %v431, 7
    %v433 = vsub.s32 1, %v432
    %v434 = vrot.slane %v425, %v433
    %v435 = vlaneseq
    %v436 = vshrl.u32 %v435, 7
    %v437 = vsub.s32 2, %v436
    %v438 = vrot.slane %v425, %v437
    %v439 = vlaneseq
    %v440 = vshrl.u32 %v439, 7
    %v441 = vsub.s32 3, %v440
    %v442 = vrot.slane %v425, %v441
    %v447 = vmul.f32 %v330, %v430
    %v448 = vmul.f32 %v332, %v434
    %v449 = vmul.f32 %v371, %v438
    %v450 = vmul.f32 %v373, %v442
    %v451 = vsel %vm378, %v447, 0.0
    %v452 = vsel %vm378, %v448, 0.0
    %v453 = vadd.f32 %v451, %v452
    %v454 = vsel %vm378, %v449, 0.0
    %v455 = vadd.f32 %v453, %v454
    %v456 = vsel %vm378, %v450, 0.0
    %v457 = vadd.f32 %v455, %v456
    %458 = vadd.xlane.f32.xlu0 %v457
    %v459 = vpop.xlane.xlu0 %458
    %v460 = vadd.f32 %v424, %v459
    %461 = vst.msk [vmem:[#allocation4] sm:$0xf] %vm421, %v460
    %v462 = vld [vmem:[#allocation5] sm:$0xf]
    %v463 = vld [vmem:[#allocation12] sm:$0xf]
    %v465 = vlaneseq
    %v466 = vshrl.u32 %v465, 7
    %v467 = vsub.s32 0, %v466
    %v468 = vrot.slane %v463, %v467
    %v469 = vlaneseq
    %v470 = vshrl.u32 %v469, 7
    %v471 = vsub.s32 1, %v470
    %v472 = vrot.slane %v463, %v471
    %v473 = vlaneseq
    %v474 = vshrl.u32 %v473, 7
    %v475 = vsub.s32 2, %v474
    %v476 = vrot.slane %v463, %v475
    %v477 = vlaneseq
    %v478 = vshrl.u32 %v477, 7
    %v479 = vsub.s32 3, %v478
    %v480 = vrot.slane %v463, %v479
    %v485 = vmul.f32 %v330, %v468
    %v486 = vmul.f32 %v332, %v472
    %v487 = vmul.f32 %v371, %v476
    %v488 = vmul.f32 %v373, %v480
    %v489 = vsel %vm378, %v485, 0.0
    %v490 = vsel %vm378, %v486, 0.0
    %v491 = vadd.f32 %v489, %v490
    %v492 = vsel %vm378, %v487, 0.0
    %v493 = vadd.f32 %v491, %v492
    %v494 = vsel %vm378, %v488, 0.0
    %v495 = vadd.f32 %v493, %v494
    %496 = vadd.xlane.f32.xlu0 %v495
    %v497 = vpop.xlane.xlu0 %496
    %v498 = vadd.f32 %v462, %v497
    %499 = vst.msk [vmem:[#allocation5] sm:$0xf] %vm421, %v498
    // Predicated region
    $region42: #{tpu_custom_call.1} parent=1 // pred_check
      %p500 = pneg %p71
    $region43: #{tpu_custom_call.1} parent=1 // pred_check_branch
      %502 = sbr.rel (%p500) target = $region45
    $region44: #{tpu_custom_call.1} parent=1 // pred_region
      %v503 = vld [vmem:[#allocation2] sm:$0xf]
      %v504 = vld [vmem:[#allocation3] sm:$0xf]
      %v505 = vlog2.pop %v504
      %v506 = vmul.f32 %v505, 0.6931472
      %v507 = vadd.f32 %v503, %v506
      %v508 = vlaneseq
      %v509 = vand.u32 %v508, 127
      %vm510 = vcmp.eq.s32.totalorder %v509, 0
      %v511 = vld [vmem:[#allocation4] sm:$0xf]
      %vm512 = vcmp.eq.s32.totalorder %v509, 1
      %v513 = vld [vmem:[#allocation5] sm:$0xf]
      %vm514 = vcmp.eq.s32.totalorder %v509, 2
      %516 = vset.pattern.permute.xlu0 0
      %517 = vperm.xlu0 %516, %v507
      %v518 = vpop.permute.xlu0 %517
      %v520 = vsel %vm514, %v518, 0.0
      %522 = vset.pattern.permute.xlu0 0
      %523 = vperm.xlu0 %522, %v513
      %v524 = vpop.permute.xlu0 %523
      %v526 = vsel %vm512, %v524, %v520
      %528 = vset.pattern.permute.xlu0 0
      %529 = vperm.xlu0 %528, %v511
      %v530 = vpop.permute.xlu0 %529
      %v532 = vsel %vm510, %v530, %v526
      %533 = vst [vmem:[#allocation14] sm:$0xf] %v532
    $region45: #{tpu_custom_call.1} parent=1 // pred_fallthru
      _
    // Predicated region
    $region46: #{tpu_custom_call.1} parent=1 // pred_check
      _
    $region47: #{tpu_custom_call.1} parent=1 // pred_check_branch
      %535 = sbr.rel (0) target = $region49
    $region48: #{tpu_custom_call.1} parent=1 // pred_region
      %s537 = ssub.s32 64, 64
      %538 = vsyncadd [#allocation8], %s537
      %s540 = sshll.u32 [#allocation14], 4
      %s541 = int_to_ptr.vmem [resolvable:$true] %s540
      %543 = dma.vmem_to_hbm [thread:$0]  %s541, 64, %s5, [#allocation8]
    $region49: #{tpu_custom_call.1} parent=1 // pred_fallthru
      _
    // Predicated region
    $region50: #{tpu_custom_call.1} parent=1 // pred_check
      _
    $region51: #{tpu_custom_call.1} parent=1 // pred_check_branch
      %545 = sbr.rel (0) target = $region53
    $region52: #{tpu_custom_call.1} parent=1 // pred_region
      %546 = dma.done [#allocation8], 64
    $region53: #{tpu_custom_call.1} parent=1 // pred_fallthru
      _
    %547 = vsyncpa [#allocation7], 1
    %548 = vsyncpa [#allocation10], 1
    %549 = vsyncpa [#allocation13], 1
    %550 = vsyncpa [#allocation8], 1

</llo_original>
